<compile_context>
chip_gen: v7x
topology: tpu7x:2x2x1
jax: 0.10.0
libtpu: 0.0.40
codegen_flags: <defaults>
</compile_context>

<pallas_src>
import functools

import jax
import jax.numpy as jnp
from jax.experimental import pallas as pl
from jax.experimental.pallas import tpu as pltpu


# ---------------------------------------------------------------------------
# One-shot prologue: selector softmax fused with the first MLP layer.
#   M      = softmax(logits / temp)       (K, D)
#   W_eff  = M^T @ W1                     (D, H)
# ---------------------------------------------------------------------------
def _selector_weff_kernel(logits_ref, w1_ref, weff_ref, *, inv_temp):
    logits = logits_ref[...].astype(jnp.float32)
    # exp((logits - max) * inv_temp): well conditioned even at temp = 1e-6.
    s = (logits - jnp.max(logits, axis=-1, keepdims=True)) * inv_temp
    e = jnp.exp(s)
    m = e / jnp.sum(e, axis=-1, keepdims=True)            # (K, D) f32, exact div
    # W_eff[d, h] = sum_k M[k, d] * W1[k, h]  (contract dim 0 of both).
    # One-shot, so the implied relayout of m is off the steady-state path.
    w_eff = jax.lax.dot_general(
        m, w1_ref[...].astype(jnp.float32),
        dimension_numbers=(((0,), (0,)), ((), ())),
        preferred_element_type=jnp.float32)                # (D, H) f32
    weff_ref[...] = w_eff.astype(weff_ref.dtype)


# ---------------------------------------------------------------------------
# Steady-state kernel: one batch tile per grid step.
#   pred = relu(x @ W_eff + b1) @ W2 + b2
# ---------------------------------------------------------------------------
def _masked_mlp_kernel(x_ref, weff_ref, b1_ref, w2_ref, b2_ref, out_ref):
    x = x_ref[...]
    if x.dtype != jnp.bfloat16:
        x = x.astype(jnp.bfloat16)
    # Single deep-contraction MXU matmul over D, f32 accumulation.
    h = jnp.dot(x, weff_ref[...], preferred_element_type=jnp.float32)  # (tb, H)
    h = jnp.maximum(h + b1_ref[...], 0.0)                              # f32 VPU
    pred = jnp.dot(h.astype(jnp.bfloat16), w2_ref[...],
                   preferred_element_type=jnp.float32)                 # (tb, O)
    # TODO(synk): O << 128 means this store is a masked (lane-sparse) vst;
    # a lane-dense (b_pad//16, 128) output slab would remove it, but output
    # bytes are only ~6% of the x traffic here, so it is left as-is.
    out_ref[...] = (pred + b2_ref[...]).astype(out_ref.dtype)


def differentiable_selector_forward(x, logits, w1, b1, w2, b2,
                                    temp=1e-6, block_b=2048):
    """Pallas implementation of DifferentiableSelector.forward."""
    B, D = x.shape
    K = logits.shape[0]
    H = w1.shape[1]
    O = w2.shape[1]

    # --- one-shot prologue: W_eff = softmax(logits/temp)^T @ W1, in bf16 ---
    w_eff = pl.pallas_call(
        functools.partial(_selector_weff_kernel, inv_temp=1.0 / float(temp)),
        out_shape=jax.ShapeDtypeStruct((D, H), jnp.bfloat16),
        grid=(1,),
        in_specs=[pl.BlockSpec((K, D), lambda i: (0, 0)),
                  pl.BlockSpec((K, H), lambda i: (0, 0))],
        out_specs=pl.BlockSpec((D, H), lambda i: (0, 0)),
    )(logits, w1)

    # --- batch tile sizing ---
    itemsize = jnp.dtype(x.dtype).itemsize
    # Cap the x block so the double-buffered input stays well under the
    # scoped-VMEM budget on all generations (v7x: 32 MiB scoped / 64 MiB phys).
    max_block_bytes = 6 * 1024 * 1024
    tb_cap = max(8, (max_block_bytes // (D * itemsize)) // 8 * 8)
    tb = min(block_b, tb_cap, B)
    if tb < B:
        tb = max(8, (tb // 8) * 8)
    elif B >= 16:
        # v7x megacore: prefer >= 2 grid steps so both TensorCores get work.
        tb = max(8, ((pl.cdiv(B, 2) + 7) // 8) * 8)
    b_pad = pl.cdiv(B, tb) * tb
    if b_pad != B:
        x = jnp.pad(x, ((0, b_pad - B), (0, 0)))
    grid = (b_pad // tb,)

    def _rep(shape):
        # Replicated (grid-invariant) full-array block.
        return pl.BlockSpec(shape, lambda i: tuple(0 for _ in shape))

    out = pl.pallas_call(
        _masked_mlp_kernel,
        out_shape=jax.ShapeDtypeStruct((b_pad, O), jnp.float32),
        grid=grid,
        in_specs=[
            pl.BlockSpec((tb, D), lambda i: (i, 0)),   # x: batch-tiled, pipelined
            _rep((D, H)),                              # W_eff (bf16, precomputed)
            _rep((1, H)),                              # b1 (f32)
            _rep((H, O)),                              # w2 (bf16, pre-cast)
            _rep((1, O)),                              # b2 (f32)
        ],
        out_specs=pl.BlockSpec((tb, O), lambda i: (i, 0)),
        compiler_params=pltpu.CompilerParams(
            dimension_semantics=("parallel",),
            vmem_limit_bytes=32 * 1024 * 1024),
    )(x, w_eff,
      b1.reshape(1, -1).astype(jnp.float32),
      w2.astype(jnp.bfloat16),
      b2.reshape(1, -1).astype(jnp.float32))
    return out[:B]


def _reference_forward(x, logits, w1, b1, w2, b2, temp=1e-6):
    m = jax.nn.softmax(logits / temp, axis=-1)
    x_masked = x @ m.T
    h = jnp.maximum(x_masked @ w1 + b1, 0.0)
    return h @ w2 + b2


if __name__ == "__main__":
    # Small shapes consistent with the module's forward (tabular features).
    # B chosen so the multi-step grid and the pad-to-tile path are exercised.
    B, D, K, H, O = 200, 128, 16, 32, 8

    key = jax.random.PRNGKey(0)
    kx, kl, kw1, kb1, kw2, kb2 = jax.random.split(key, 6)

    x = jax.random.normal(kx, (B, D), dtype=jnp.float32)
    # selector_layer parameters: logits (K, D)
    logits = 0.01 * jax.random.normal(kl, (K, D), dtype=jnp.float32)
    # model parameters: MLP (K -> H -> O)
    w1 = jax.random.normal(kw1, (K, H), dtype=jnp.float32) / jnp.sqrt(K)
    b1 = 0.1 * jax.random.normal(kb1, (H,), dtype=jnp.float32)
    w2 = jax.random.normal(kw2, (H, O), dtype=jnp.float32) / jnp.sqrt(H)
    b2 = 0.1 * jax.random.normal(kb2, (O,), dtype=jnp.float32)

    pred = differentiable_selector_forward(x, logits, w1, b1, w2, b2, temp=1e-6)
    pred = jax.block_until_ready(pred)

    ref = _reference_forward(x, logits, w1, b1, w2, b2, temp=1e-6)
    assert pred.shape == (B, O)
    # bf16 MXU operands with f32 accumulation -> slightly looser tolerance
    # than the pure-f32 reference.
    assert jnp.allclose(pred, ref, atol=5e-2, rtol=5e-2), (
        float(jnp.max(jnp.abs(pred - ref))))

    print("KERNEL_OK")
</pallas_src>

<mosaic_0001>
module attributes {stable_mosaic.version = 11 : i64} {
  func.func @_selector_weff_kernel(%arg0: i32, %arg1: memref<16x128xf32, #tpu.memory_space<vmem>>, %arg2: memref<16x32xf32, #tpu.memory_space<vmem>>, %arg3: memref<128x32xbf16, #tpu.memory_space<vmem>>) attributes {dimension_semantics = [#tpu.dimension_semantics<arbitrary>], iteration_bounds = array<i64: 1>, scalar_prefetch = 0 : i64, scratch_operands = 0 : i64, tpu.core_type = #tpu.core_type<tc>, window_params = [{pipeline_mode = #tpu.pipeline_mode<synchronous>, transform_indices = @transform_0, window_bounds = array<i64: 16, 128>}, {pipeline_mode = #tpu.pipeline_mode<synchronous>, transform_indices = @transform_1, window_bounds = array<i64: 16, 32>}, {pipeline_mode = #tpu.pipeline_mode<synchronous>, transform_indices = @transform_2, window_bounds = array<i64: 128, 32>}]} {
    %c0 = arith.constant 0 : index
    %c0_0 = arith.constant 0 : index
    %0 = vector.load %arg1[%c0, %c0_0] : memref<16x128xf32, #tpu.memory_space<vmem>>, vector<16x128xf32>
    %cst = arith.constant dense<0xFF800000> : vector<16xf32>
    %1 = vector.multi_reduction <maximumf>, %0, %cst [1] : vector<16x128xf32> to vector<16xf32>
    %2 = vector.shape_cast %1 : vector<16xf32> to vector<16x1xf32>
    %3 = vector.broadcast %2 : vector<16x1xf32> to vector<16x128xf32>
    %4 = arith.subf %0, %3 : vector<16x128xf32>
    %cst_1 = arith.constant 1.000000e+06 : f32
    %5 = vector.broadcast %cst_1 : f32 to vector<16x128xf32>
    %6 = arith.mulf %4, %5 : vector<16x128xf32>
    %7 = math.exp %6 : vector<16x128xf32>
    %cst_2 = arith.constant dense<0.000000e+00> : vector<16xf32>
    %8 = vector.multi_reduction <add>, %7, %cst_2 [1] : vector<16x128xf32> to vector<16xf32>
    %9 = vector.shape_cast %8 : vector<16xf32> to vector<16x1xf32>
    %10 = vector.broadcast %9 : vector<16x1xf32> to vector<16x128xf32>
    %11 = arith.divf %7, %10 : vector<16x128xf32>
    %c0_3 = arith.constant 0 : index
    %c0_4 = arith.constant 0 : index
    %12 = vector.load %arg2[%c0_3, %c0_4] : memref<16x32xf32, #tpu.memory_space<vmem>>, vector<16x32xf32>
    %cst_5 = arith.constant dense<0.000000e+00> : vector<128x32xf32>
    %13 = tpu.matmul %11, %12, %cst_5 {dimension_numbers = #tpu.dot_dimension_numbers<[0], [0], [1], [1], [0, 1, 1, 1], [], []>} : vector<16x128xf32>, vector<16x32xf32>, vector<128x32xf32> -> vector<128x32xf32>
    %14 = arith.truncf %13 : vector<128x32xf32> to vector<128x32xbf16>
    %c0_6 = arith.constant 0 : index
    %c0_7 = arith.constant 0 : index
    %15 = vector.load %arg3[%c0_6, %c0_7] : memref<128x32xbf16, #tpu.memory_space<vmem>>, vector<128x32xbf16>
    tpu.vector_store %arg3[%c0_6, %c0_7], %14 {strides = array<i32>} : memref<128x32xbf16, #tpu.memory_space<vmem>>, vector<128x32xbf16>,
    return
  }
  func.func @transform_0(%arg0: i32) -> (i32, i32) {
    %c0_i32 = arith.constant 0 : i32
    %c0_i32_0 = arith.constant 0 : i32
    %c0_i32_1 = arith.constant 0 : i32
    return %c0_i32, %c0_i32_0 : i32, i32
  }
  func.func @transform_1(%arg0: i32) -> (i32, i32) {
    %c0_i32 = arith.constant 0 : i32
    %c0_i32_0 = arith.constant 0 : i32
    %c0_i32_1 = arith.constant 0 : i32
    return %c0_i32, %c0_i32_0 : i32, i32
  }
  func.func @transform_2(%arg0: i32) -> (i32, i32) {
    %c0_i32 = arith.constant 0 : i32
    %c0_i32_0 = arith.constant 0 : i32
    %c0_i32_1 = arith.constant 0 : i32
    return %c0_i32, %c0_i32_0 : i32, i32
  }
}

</mosaic_0001>

<llo_original>
// kernel: tpu_custom_call.1
$region0: #{tpu_custom_call.1}
  #allocation0 [shape = 'u32[]', space=smem, size = 0x4, offset = 0x4, fixed_abs, tag = 'smem constant byte address 0x4 - core index']
  #allocation1 [shape = 'u32[144,128]{1,0:T(1,128)}', space=vmem, size = 0x12000, scoped, tag = 'internal scratch']
  %s0 = inlined_call_operand.hbm [shape: f32[16,128], index: 0, kind: input, shape index: {}]
  %s1 = inlined_call_operand.hbm [shape: f32[16,32], index: 1, kind: input, shape index: {}]
  %s2 = inlined_call_operand.vmem [shape: bf16[128,32], index: 2, kind: output, shape index: {}]
  %s3 = sld [smem:[#allocation0]]
  $region26: #{tpu_custom_call.1} parent=0
    _
  %s5 = ssub.s32 1, %s3
  %s6 = scalar_select 0, %s5, %s3
  $region1: #{tpu_custom_call.1} parent=0
    #allocation2 [shape = 'u8[8192]{0}', space=vmem, size = 0x2000, scoped, tag = 'input window, operand 0, single buffered']
    #allocation3 [shape = 's32[1]{0}', space=sflag, size = 0x4, scoped, tag = 'scoped memory for tpu_custom_call.1']
    #allocation4 [shape = 'u8[8192]{0}', space=vmem, size = 0x2000, scoped, tag = 'input window, operand 1, single buffered']
    #allocation5 [shape = 's32[1]{0}', space=sflag, size = 0x4, scoped, tag = 'scoped memory for tpu_custom_call.1']
    %7 = vsyncpa [#allocation3], 0
    %8 = vsyncpa [#allocation5], 0
    // Predicated region
    $region2: #{tpu_custom_call.1} parent=1 // pred_check
      _
    $region3: #{tpu_custom_call.1} parent=1 // pred_check_branch
      %10 = sbr.rel (0) target = $region5
    $region4: #{tpu_custom_call.1} parent=1 // pred_region
      %s12 = ssub.s32 256, 256
      %13 = vsyncadd [#allocation3], %s12
      %s14 = sshll.u32 [#allocation2], 4
      %s15 = int_to_ptr.vmem [resolvable:$true] %s14
      %20 = dma.hbm_to_vmem [thread:$0]  %s0, 256, %s15, [#allocation3], 128, 128, 8
    $region5: #{tpu_custom_call.1} parent=1 // pred_fallthru
      _
    // Predicated region
    $region6: #{tpu_custom_call.1} parent=1 // pred_check
      _
    $region7: #{tpu_custom_call.1} parent=1 // pred_check_branch
      %22 = sbr.rel (0) target = $region9
    $region8: #{tpu_custom_call.1} parent=1 // pred_region
      %s24 = ssub.s32 256, 256
      %25 = vsyncadd [#allocation5], %s24
      %s26 = sshll.u32 [#allocation4], 4
      %s27 = int_to_ptr.vmem [resolvable:$true] %s26
      %32 = dma.hbm_to_vmem [thread:$0]  %s1, 256, %s27, [#allocation5], 128, 128, 8
    $region9: #{tpu_custom_call.1} parent=1 // pred_fallthru
      _
    // Predicated region
    $region10: #{tpu_custom_call.1} parent=1 // pred_check
      _
    $region11: #{tpu_custom_call.1} parent=1 // pred_check_branch
      %34 = sbr.rel (0) target = $region13
    $region12: #{tpu_custom_call.1} parent=1 // pred_region
      %35 = dma.done [#allocation3], 256
    $region13: #{tpu_custom_call.1} parent=1 // pred_fallthru
      _
    // Predicated region
    $region14: #{tpu_custom_call.1} parent=1 // pred_check
      _
    $region15: #{tpu_custom_call.1} parent=1 // pred_check_branch
      %37 = sbr.rel (0) target = $region17
    $region16: #{tpu_custom_call.1} parent=1 // pred_region
      %38 = dma.done [#allocation5], 256
    $region17: #{tpu_custom_call.1} parent=1 // pred_fallthru
      _
    %v39 = vld [vmem:[#allocation2] sm:$0xff]
    %v40 = vld [vmem:[#allocation2 + $0x8] sm:$0xff]
    %41 = vmax.xlane.f32.xlu0 %v39
    %v42 = vpop.xlane.xlu0 %41
    %43 = vmax.xlane.f32.xlu0 %v40
    %v44 = vpop.xlane.xlu0 %43
    %v45 = vsub.f32 %v39, %v42
    %v46 = vsub.f32 %v40, %v44
    %v47 = vmul.f32 %v45, 1000000.0
    %v48 = vmul.f32 %v46, 1000000.0
    %v49 = vmul.f32 %v47, 1.442695
    %v50 = vpow.pop %v49
    %v51 = vmul.f32 %v48, 1.442695
    %v52 = vpow.pop %v51
    %53 = vadd.xlane.f32.xlu0 %v50
    %v54 = vpop.xlane.xlu0 %53
    %55 = vadd.xlane.f32.xlu0 %v52
    %v56 = vpop.xlane.xlu0 %55
    %v57 = vrcp.pop %v54
    %v58 = vmul.f32 %v50, %v57
    %v59 = vrcp.pop %v56
    %v60 = vmul.f32 %v52, %v59
    %v61 = vld [vmem:[#allocation4] sm:$0xff]
    %v62 = vld [vmem:[#allocation4 + $0x8] sm:$0xff]
    %63 = vxpose.xlu0.b32.start [1/16] %v58, 128
    %64 = vxpose.xlu0.b32.cont [2/16] %v60, 128
    %65 = vxpose.xlu0.b32.cont [3/16] 0.0, 128
    %66 = vxpose.xlu0.b32.cont [4/16] 0.0, 128
    %67 = vxpose.xlu0.b32.cont [5/16] 0.0, 128
    %68 = vxpose.xlu0.b32.cont [6/16] 0.0, 128
    %69 = vxpose.xlu0.b32.cont [7/16] 0.0, 128
    %70 = vxpose.xlu0.b32.cont [8/16] 0.0, 128
    %71 = vxpose.xlu0.b32.cont [9/16] 0.0, 128
    %72 = vxpose.xlu0.b32.cont [10/16] 0.0, 128
    %73 = vxpose.xlu0.b32.cont [11/16] 0.0, 128
    %74 = vxpose.xlu0.b32.cont [12/16] 0.0, 128
    %75 = vxpose.xlu0.b32.cont [13/16] 0.0, 128
    %76 = vxpose.xlu0.b32.cont [14/16] 0.0, 128
    %77 = vxpose.xlu0.b32.cont [15/16] 0.0, 128
    %78 = vxpose.xlu0.b32.end [16/16] 0.0, 128
    %v79 = vpop.trf.xlu0
    %v80 = vpop.trf.xlu0
    %v81 = vpop.trf.xlu0
    %v82 = vpop.trf.xlu0
    %v83 = vpop.trf.xlu0
    %v84 = vpop.trf.xlu0
    %v85 = vpop.trf.xlu0
    %v86 = vpop.trf.xlu0
    %v87 = vpop.trf.xlu0
    %v88 = vpop.trf.xlu0
    %v89 = vpop.trf.xlu0
    %v90 = vpop.trf.xlu0
    %v91 = vpop.trf.xlu0
    %v92 = vpop.trf.xlu0
    %v93 = vpop.trf.xlu0
    %v94 = vpop.trf.xlu0
    %vm95 = vcmask 130048
    %v97 = vsel %vm95, %v79, 0
    %v100 = vsel %vm95, %v80, 0
    %v103 = vsel %vm95, %v81, 0
    %v106 = vsel %vm95, %v82, 0
    %v109 = vsel %vm95, %v83, 0
    %v112 = vsel %vm95, %v84, 0
    %v115 = vsel %vm95, %v85, 0
    %v118 = vsel %vm95, %v86, 0
    %v121 = vsel %vm95, %v87, 0
    %v124 = vsel %vm95, %v88, 0
    %v127 = vsel %vm95, %v89, 0
    %v130 = vsel %vm95, %v90, 0
    %v133 = vsel %vm95, %v91, 0
    %v136 = vsel %vm95, %v92, 0
    %v139 = vsel %vm95, %v93, 0
    %v142 = vsel %vm95, %v94, 0
    %144 = vmatprep.subr.mxu0 0.0
    %145 = vmatpush1.msra.mxu0 %v61
    %146 = vmatprep.subr.mxu0 0.0
    %147 = vmatpush1.msra.mxu0 %v62
    %148 = vmatprep.subr.mxu0 0.0
    %149 = vmatpush1.msra.mxu0 0.0
    %150 = vmatprep.subr.mxu0 0.0
    %151 = vmatpush1.msra.mxu0 0.0
    %152 = vmatprep.subr.mxu0 0.0
    %153 = vmatpush1.msra.mxu0 0.0
    %154 = vmatprep.subr.mxu0 0.0
    %155 = vmatpush1.msra.mxu0 0.0
    %156 = vmatprep.subr.mxu0 0.0
    %157 = vmatpush1.msra.mxu0 0.0
    %158 = vmatprep.subr.mxu0 0.0
    %159 = vmatpush1.msra.mxu0 0.0
    %160 = vmatprep.subr.mxu0 0.0
    %161 = vmatpush1.msra.mxu0 0.0
    %162 = vmatprep.subr.mxu0 0.0
    %163 = vmatpush1.msra.mxu0 0.0
    %164 = vmatprep.subr.mxu0 0.0
    %165 = vmatpush1.msra.mxu0 0.0
    %166 = vmatprep.subr.mxu0 0.0
    %167 = vmatpush1.msra.mxu0 0.0
    %168 = vmatprep.subr.mxu0 0.0
    %169 = vmatpush1.msra.mxu0 0.0
    %170 = vmatprep.subr.mxu0 0.0
    %171 = vmatpush1.msra.mxu0 0.0
    %172 = vmatprep.subr.mxu0 0.0
    %173 = vmatpush1.msra.mxu0 0.0
    %174 = vmatprep.subr.mxu0 0.0
    %175 = vmatpush1.msra.mxu0 0.0
    %176 = vmatprep.subr.mxu0 0.0
    %177 = vmatpush1.msra.mxu0 0.0
    %178 = vmatprep.subr.mxu0 0.0
    %179 = vmatpush1.msra.mxu0 0.0
    %180 = vmatprep.subr.mxu0 0.0
    %181 = vmatpush1.msra.mxu0 0.0
    %182 = vmatprep.subr.mxu0 0.0
    %183 = vmatpush1.msra.mxu0 0.0
    %184 = vmatprep.subr.mxu0 0.0
    %185 = vmatpush1.msra.mxu0 0.0
    %186 = vmatprep.subr.mxu0 0.0
    %187 = vmatpush1.msra.mxu0 0.0
    %188 = vmatprep.subr.mxu0 0.0
    %189 = vmatpush1.msra.mxu0 0.0
    %190 = vmatprep.subr.mxu0 0.0
    %191 = vmatpush1.msra.mxu0 0.0
    %192 = vmatprep.subr.mxu0 0.0
    %193 = vmatpush1.msra.mxu0 0.0
    %194 = vmatprep.subr.mxu0 0.0
    %195 = vmatpush1.msra.mxu0 0.0
    %196 = vmatprep.subr.mxu0 0.0
    %197 = vmatpush1.msra.mxu0 0.0
    %198 = vmatprep.subr.mxu0 0.0
    %199 = vmatpush1.msra.mxu0 0.0
    %200 = vmatprep.subr.mxu0 0.0
    %201 = vmatpush1.msra.mxu0 0.0
    %202 = vmatprep.subr.mxu0 0.0
    %203 = vmatpush1.msra.mxu0 0.0
    %204 = vmatprep.subr.mxu0 0.0
    %205 = vmatpush1.msra.mxu0 0.0
    %206 = vmatprep.subr.mxu0 0.0
    %207 = vmatpush1.msra.mxu0 0.0
    %208 = vmatprep.mubr.f32.mxu0 0.0
    %209 = vmatmul.mubr.f32.gmra.mrb[0].mxu0 %v97
    %v210 = vpop.f32.mrb[0].mxu0
    %v211 = vadd.f32 0.0, %v210
    %v212 = vpop.f32.mrb[0].mxu0
    %213 = vmatprep.mubr.f32.mxu0 0.0
    %214 = vmatmul.mubr.f32.gmra.mrb[0].mxu0 %v100
    %v215 = vpop.f32.mrb[0].mxu0
    %v216 = vadd.f32 0.0, %v215
    %v217 = vpop.f32.mrb[0].mxu0
    %218 = vmatprep.mubr.f32.mxu0 0.0
    %219 = vmatmul.mubr.f32.gmra.mrb[0].mxu0 %v103
    %v220 = vpop.f32.mrb[0].mxu0
    %v221 = vadd.f32 0.0, %v220
    %v222 = vpop.f32.mrb[0].mxu0
    %223 = vmatprep.mubr.f32.mxu0 0.0
    %224 = vmatmul.mubr.f32.gmra.mrb[0].mxu0 %v106
    %v225 = vpop.f32.mrb[0].mxu0
    %v226 = vadd.f32 0.0, %v225
    %v227 = vpop.f32.mrb[0].mxu0
    %228 = vmatprep.mubr.f32.mxu0 0.0
    %229 = vmatmul.mubr.f32.gmra.mrb[0].mxu0 %v109
    %v230 = vpop.f32.mrb[0].mxu0
    %v231 = vadd.f32 0.0, %v230
    %v232 = vpop.f32.mrb[0].mxu0
    %233 = vmatprep.mubr.f32.mxu0 0.0
    %234 = vmatmul.mubr.f32.gmra.mrb[0].mxu0 %v112
    %v235 = vpop.f32.mrb[0].mxu0
    %v236 = vadd.f32 0.0, %v235
    %v237 = vpop.f32.mrb[0].mxu0
    %238 = vmatprep.mubr.f32.mxu0 0.0
    %239 = vmatmul.mubr.f32.gmra.mrb[0].mxu0 %v115
    %v240 = vpop.f32.mrb[0].mxu0
    %v241 = vadd.f32 0.0, %v240
    %v242 = vpop.f32.mrb[0].mxu0
    %243 = vmatprep.mubr.f32.mxu0 0.0
    %244 = vmatmul.mubr.f32.gmra.mrb[0].mxu0 %v118
    %v245 = vpop.f32.mrb[0].mxu0
    %v246 = vadd.f32 0.0, %v245
    %v247 = vpop.f32.mrb[0].mxu0
    %248 = vmatprep.mubr.f32.mxu0 0.0
    %249 = vmatmul.mubr.f32.gmra.mrb[0].mxu0 %v121
    %v250 = vpop.f32.mrb[0].mxu0
    %v251 = vadd.f32 0.0, %v250
    %v252 = vpop.f32.mrb[0].mxu0
    %253 = vmatprep.mubr.f32.mxu0 0.0
    %254 = vmatmul.mubr.f32.gmra.mrb[0].mxu0 %v124
    %v255 = vpop.f32.mrb[0].mxu0
    %v256 = vadd.f32 0.0, %v255
    %v257 = vpop.f32.mrb[0].mxu0
    %258 = vmatprep.mubr.f32.mxu0 0.0
    %259 = vmatmul.mubr.f32.gmra.mrb[0].mxu0 %v127
    %v260 = vpop.f32.mrb[0].mxu0
    %v261 = vadd.f32 0.0, %v260
    %v262 = vpop.f32.mrb[0].mxu0
    %263 = vmatprep.mubr.f32.mxu0 0.0
    %264 = vmatmul.mubr.f32.gmra.mrb[0].mxu0 %v130
    %v265 = vpop.f32.mrb[0].mxu0
    %v266 = vadd.f32 0.0, %v265
    %v267 = vpop.f32.mrb[0].mxu0
    %268 = vmatprep.mubr.f32.mxu0 0.0
    %269 = vmatmul.mubr.f32.gmra.mrb[0].mxu0 %v133
    %v270 = vpop.f32.mrb[0].mxu0
    %v271 = vadd.f32 0.0, %v270
    %v272 = vpop.f32.mrb[0].mxu0
    %273 = vmatprep.mubr.f32.mxu0 0.0
    %274 = vmatmul.mubr.f32.gmra.mrb[0].mxu0 %v136
    %v275 = vpop.f32.mrb[0].mxu0
    %v276 = vadd.f32 0.0, %v275
    %v277 = vpop.f32.mrb[0].mxu0
    %278 = vmatprep.mubr.f32.mxu0 0.0
    %279 = vmatmul.mubr.f32.gmra.mrb[0].mxu0 %v139
    %v280 = vpop.f32.mrb[0].mxu0
    %v281 = vadd.f32 0.0, %v280
    %v282 = vpop.f32.mrb[0].mxu0
    %283 = vmatprep.mubr.f32.mxu0 0.0
    %284 = vmatmul.mubr.f32.gmra.mrb[0].mxu0 %v142
    %v285 = vpop.f32.mrb[0].mxu0
    %v286 = vadd.f32 0.0, %v285
    %v287 = vpop.f32.mrb[0].mxu0
    %288 = vdwg.mxu0
    %v289 = vpack.c.bf16 %v216, %v211
    %v290 = vpack.c.bf16 %v226, %v221
    %v291 = vpack.c.bf16 %v236, %v231
    %v292 = vpack.c.bf16 %v246, %v241
    %v293 = vpack.c.bf16 %v256, %v251
    %v294 = vpack.c.bf16 %v266, %v261
    %v295 = vpack.c.bf16 %v276, %v271
    %v296 = vpack.c.bf16 %v286, %v281
    %v305 = vunpack.c.l.b16 %v289
    %v306 = vunpack.c.h.b16 %v289
    %v307 = vunpack.c.l.b16 %v290
    %v308 = vunpack.c.h.b16 %v290
    %v309 = vunpack.c.l.b16 %v291
    %v310 = vunpack.c.h.b16 %v291
    %v311 = vunpack.c.l.b16 %v292
    %v312 = vunpack.c.h.b16 %v292
    %v313 = vunpack.c.l.b16 %v293
    %v314 = vunpack.c.h.b16 %v293
    %v315 = vunpack.c.l.b16 %v294
    %v316 = vunpack.c.h.b16 %v294
    %v317 = vunpack.c.l.b16 %v295
    %v318 = vunpack.c.h.b16 %v295
    %v319 = vunpack.c.l.b16 %v296
    %v320 = vunpack.c.h.b16 %v296
    %v321 = vpack.c.b16 %v305, %v305
    %v322 = vpack.c.b16 %v306, %v306
    %v323 = vpack.c.b16 %v307, %v307
    %v324 = vpack.c.b16 %v308, %v308
    %v325 = vpack.c.b16 %v309, %v309
    %v326 = vpack.c.b16 %v310, %v310
    %v327 = vpack.c.b16 %v311, %v311
    %v328 = vpack.c.b16 %v312, %v312
    %v329 = vpack.c.b16 %v313, %v313
    %v330 = vpack.c.b16 %v314, %v314
    %v331 = vpack.c.b16 %v315, %v315
    %v332 = vpack.c.b16 %v316, %v316
    %v333 = vpack.c.b16 %v317, %v317
    %v334 = vpack.c.b16 %v318, %v318
    %v335 = vpack.c.b16 %v319, %v319
    %v336 = vpack.c.b16 %v320, %v320
    %vm353 = vcmask 257024
    %354 = vst.msk [vmem:[%s2] sm:$0xf] %vm353, %v321
    %355 = vst.msk [vmem:[%s2 + $0x4] sm:$0xf] %vm353, %v322
    %356 = vst.msk [vmem:[%s2 + $0x8] sm:$0xf] %vm353, %v323
    %357 = vst.msk [vmem:[%s2 + $0xc] sm:$0xf] %vm353, %v324
    %358 = vst.msk [vmem:[%s2 + $0x10] sm:$0xf] %vm353, %v325
    %359 = vst.msk [vmem:[%s2 + $0x14] sm:$0xf] %vm353, %v326
    %360 = vst.msk [vmem:[%s2 + $0x18] sm:$0xf] %vm353, %v327
    %361 = vst.msk [vmem:[%s2 + $0x1c] sm:$0xf] %vm353, %v328
    %362 = vst.msk [vmem:[%s2 + $0x20] sm:$0xf] %vm353, %v329
    %363 = vst.msk [vmem:[%s2 + $0x24] sm:$0xf] %vm353, %v330
    %364 = vst.msk [vmem:[%s2 + $0x28] sm:$0xf] %vm353, %v331
    %365 = vst.msk [vmem:[%s2 + $0x2c] sm:$0xf] %vm353, %v332
    %366 = vst.msk [vmem:[%s2 + $0x30] sm:$0xf] %vm353, %v333
    %367 = vst.msk [vmem:[%s2 + $0x34] sm:$0xf] %vm353, %v334
    %368 = vst.msk [vmem:[%s2 + $0x38] sm:$0xf] %vm353, %v335
    %369 = vst.msk [vmem:[%s2 + $0x3c] sm:$0xf] %vm353, %v336
    // Predicated region
    $region18: #{tpu_custom_call.1} parent=1 // pred_check
      _
    $region19: #{tpu_custom_call.1} parent=1 // pred_check_branch
      %371 = sbr.rel (0) target = $region21
    $region20: #{tpu_custom_call.1} parent=1 // pred_region
      _
    $region21: #{tpu_custom_call.1} parent=1 // pred_fallthru
      _
    // Predicated region
    $region22: #{tpu_custom_call.1} parent=1 // pred_check
      _
    $region23: #{tpu_custom_call.1} parent=1 // pred_check_branch
      %373 = sbr.rel (0) target = $region25
    $region24: #{tpu_custom_call.1} parent=1 // pred_region
      _
    $region25: #{tpu_custom_call.1} parent=1 // pred_fallthru
      _
    %374 = vsyncpa [#allocation3], 1
    %375 = vsyncpa [#allocation5], 1

</llo_original>
